<compile_context>
chip_gen: v6e
topology: v6e:2x2x1
jax: 0.10.0
libtpu: 0.0.40
codegen_flags: <defaults>
</compile_context>

<pallas_src>
import functools
import numpy as np

import jax
import jax.numpy as jnp
from jax.experimental import pallas as pl
from jax.experimental.pallas import tpu as pltpu

LEAKY_SLOPE = 0.01          # torch.nn.LeakyReLU default negative_slope
TAU = 0.2                   # self.tau in CLAccumCitationPopModule
HEAD_PAD = 128              # lane-dense width for the merged fc_dist|fc_out head


# ----------------------------------------------------------------------------
# Fused forward kernel (single invocation, everything resident in VMEM)
# ----------------------------------------------------------------------------
def _fused_forward_kernel(g_ref, labels_ref,
                          pop_w_ref, pop_b_ref,
                          pw1_ref, pb1_ref, pw2_ref, pb2_ref,
                          head_w_ref, head_b_ref,
                          embs_ref, head_ref,
                          *, n, box_count, tau):
    f32 = jnp.float32
    bf16 = jnp.bfloat16

    def mm(x, w):  # bf16 MXU inputs, f32 accumulation
        return jax.lax.dot_general(
            x.astype(bf16), w,
            dimension_numbers=(((1,), (0,)), ((), ())),
            preferred_element_type=f32)

    def leaky(y):  # 2 VALU ops (max + mul) instead of cmp+mul+select
        return jnp.maximum(y, LEAKY_SLOPE * y)

    # ---- pop_encoder on both views (pre-stacked [2N, H], shared weights) ----
    p = leaky(mm(g_ref[...], pop_w_ref[...]) + pop_b_ref[...])     # [2N, H] f32

    # ---- projection head (shared, both views in one matmul) -----------------
    h = jnp.maximum(mm(p, pw1_ref[...]) + pb1_ref[...], 0.0)
    z = mm(h, pw2_ref[...]) + pb2_ref[...]                          # [2N, H]

    z1 = z[:n]
    z2 = z[n:]

    # ---- simple_cl: normalize, f32 sim (dot_general, no transpose), ---------
    #      positives taken from sim's diagonal (exactly consistent with lse)
    def normalize(v):
        return v * jax.lax.rsqrt(jnp.sum(v * v, axis=-1, keepdims=True) + 1e-12)

    z1n = normalize(z1)
    z2n = normalize(z2)

    inv_tau = 1.0 / tau
    sim = jax.lax.dot_general(
        z1n, z2n,
        dimension_numbers=(((1,), (1,)), ((), ())),
        preferred_element_type=f32) * inv_tau                       # [n, n] f32

    eye = (jax.lax.broadcasted_iota(jnp.int32, (n, n), 0) ==
           jax.lax.broadcasted_iota(jnp.int32, (n, n), 1))
    pos = jnp.sum(jnp.where(eye, sim, 0.0), axis=1, keepdims=True)  # diag(sim)

    m_r = jnp.max(sim, axis=1, keepdims=True)
    lse_r = m_r + jnp.log(jnp.sum(jnp.exp(sim - m_r), axis=1, keepdims=True))
    m_c = jnp.max(sim, axis=0, keepdims=True)
    lse_c = m_c + jnp.log(jnp.sum(jnp.exp(sim - m_c), axis=0, keepdims=True))
    cl_loss = 0.5 * (jnp.mean(lse_r) + jnp.mean(lse_c)) - jnp.mean(pos)

    # ---- mean over views, merged fc_dist|fc_out head (lane-dense [n,128]) ---
    mean_embs = 0.5 * (p[:n] + p[n:])                               # [n, H]
    head = leaky(mm(mean_embs, head_w_ref[...]) + head_b_ref[...])  # [n, 128]
    dist_logits = head[:, :box_count]                               # [n, box_count]

    # ---- softmax cross-entropy over dist_logits (fused, EUP exp/log) --------
    labels = labels_ref[...]                                        # [n, 1] int32
    onehot = (labels == jax.lax.broadcasted_iota(
        jnp.int32, (n, box_count), 1)).astype(f32)
    true_logit = jnp.sum(onehot * dist_logits, axis=1, keepdims=True)
    m_d = jnp.max(dist_logits, axis=1, keepdims=True)
    lse_d = m_d + jnp.log(jnp.sum(jnp.exp(dist_logits - m_d), axis=1, keepdims=True))
    ce = jnp.mean(lse_d - true_logit)

    total_loss = cl_loss + ce

    # Fold the scalar loss into an unused padded lane of the head slab
    # (row 0, column box_count+1) — no separate (1,1) output / masked store.
    row = jax.lax.broadcasted_iota(jnp.int32, (n, HEAD_PAD), 0)
    col = jax.lax.broadcasted_iota(jnp.int32, (n, HEAD_PAD), 1)
    head = jnp.where((row == 0) & (col == box_count + 1), total_loss, head)

    # ---- outputs -------------------------------------------------------------
    embs_ref[...] = mean_embs.astype(embs_ref.dtype)
    head_ref[...] = head.astype(head_ref.dtype)      # unmasked lane-dense store


# ----------------------------------------------------------------------------
# One-time parameter preparation (hoisted out of the hot path)
# ----------------------------------------------------------------------------
def prepare_kernel_params(params):
    """Pre-cast / pre-concatenate weights once at init (not per forward)."""
    hidden, box_count = params["dist_W"].shape
    assert box_count + 2 <= HEAD_PAD
    f32, bf16 = jnp.float32, jnp.bfloat16

    head_W = jnp.concatenate(
        [params["dist_W"], params["out_W"],
         jnp.zeros((hidden, HEAD_PAD - box_count - 1), f32)], axis=1).astype(bf16)
    head_b = jnp.concatenate(
        [params["dist_b"], params["out_b"],
         jnp.zeros((HEAD_PAD - box_count - 1,), f32)], axis=0).reshape(1, HEAD_PAD)

    return {
        "pop_W": params["pop_W"].astype(bf16),
        "pop_b": params["pop_b"].reshape(1, hidden).astype(f32),
        "proj_W1": params["proj_W1"].astype(bf16),
        "proj_b1": params["proj_b1"].reshape(1, hidden).astype(f32),
        "proj_W2": params["proj_W2"].astype(bf16),
        "proj_b2": params["proj_b2"].reshape(1, hidden).astype(f32),
        "head_W": head_W,
        "head_b": head_b,
    }


# ----------------------------------------------------------------------------
# Jitted wrapper: one un-gridded pallas_call for the whole module forward
# ----------------------------------------------------------------------------
@functools.partial(jax.jit, static_argnames=("box_count", "tau"))
def cl_accum_citation_pop_forward(kparams, g1_snapshots, g2_snapshots,
                                  final_boxes, *, box_count, tau=TAU):
    n, hidden = g1_snapshots.shape

    # Stack the two views in the wrapper: one [2N, H] input, one DMA,
    # no in-kernel sublane concat.
    g = jnp.concatenate([g1_snapshots, g2_snapshots], axis=0)
    labels = final_boxes.astype(jnp.int32).reshape(n, 1)

    kernel = functools.partial(_fused_forward_kernel,
                               n=n, box_count=box_count, tau=tau)

    vmem = pl.BlockSpec(memory_space=pltpu.MemorySpace.VMEM)

    pop_embs, head_out = pl.pallas_call(
        kernel,
        out_shape=(
            jax.ShapeDtypeStruct((n, hidden), jnp.float32),    # pop_embs (mean over views)
            jax.ShapeDtypeStruct((n, HEAD_PAD), jnp.float32),  # [dist | out | loss | pad]
        ),
        in_specs=[vmem] * 10,
        out_specs=(vmem, vmem),
    )(g, labels,
      kparams["pop_W"], kparams["pop_b"],
      kparams["proj_W1"], kparams["proj_b1"],
      kparams["proj_W2"], kparams["proj_b2"],
      kparams["head_W"], kparams["head_b"])

    out = head_out[:, box_count:box_count + 1]       # fc_out column
    pop_loss = head_out[0, box_count + 1]            # folded scalar loss
    return out, pop_embs, pop_loss


# ----------------------------------------------------------------------------
# Parameter init (matches torch.nn.Linear default init)
# ----------------------------------------------------------------------------
def init_params(key, hidden_dim, box_count):
    def lin_init(k, fan_in, fan_out):
        kw, kb = jax.random.split(k)
        bound = 1.0 / np.sqrt(fan_in)
        W = jax.random.uniform(kw, (fan_in, fan_out), jnp.float32, -bound, bound)
        b = jax.random.uniform(kb, (fan_out,), jnp.float32, -bound, bound)
        return W, b

    ks = jax.random.split(key, 5)
    p = {}
    p["pop_W"], p["pop_b"] = lin_init(ks[0], hidden_dim, hidden_dim)        # pop_encoder
    p["out_W"], p["out_b"] = lin_init(ks[1], hidden_dim, 1)                 # fc_out
    p["dist_W"], p["dist_b"] = lin_init(ks[2], hidden_dim, box_count)       # fc_dist
    p["proj_W1"], p["proj_b1"] = lin_init(ks[3], hidden_dim, hidden_dim)    # proj_head L1
    p["proj_W2"], p["proj_b2"] = lin_init(ks[4], hidden_dim, hidden_dim)    # proj_head L2
    return p


# ----------------------------------------------------------------------------
# Pure-JAX reference (Precision.HIGHEST) for a sanity check
# ----------------------------------------------------------------------------
def _softmax_cross_entropy(logits, labels):
    lse = jax.scipy.special.logsumexp(logits, axis=-1)
    true_logit = jnp.take_along_axis(logits, labels[:, None], axis=-1)[:, 0]
    return jnp.mean(lse - true_logit)


def reference_forward(params, g1, g2, final_boxes, tau=TAU):
    act = lambda y: jnp.where(y > 0, y, LEAKY_SLOPE * y)
    dot = lambda a, b: jnp.dot(a, b, precision=jax.lax.Precision.HIGHEST)
    lin = lambda x, w, b: dot(x, w) + b

    p1 = act(lin(g1, params["pop_W"], params["pop_b"]))
    p2 = act(lin(g2, params["pop_W"], params["pop_b"]))

    def proj(x):
        h = jnp.maximum(lin(x, params["proj_W1"], params["proj_b1"]), 0.0)
        return lin(h, params["proj_W2"], params["proj_b2"])

    def normalize(z):
        return z / jnp.sqrt(jnp.sum(z * z, -1, keepdims=True) + 1e-12)

    z1, z2 = proj(p1), proj(p2)
    sim = dot(normalize(z1), normalize(z2).T) / tau
    idx = jnp.arange(sim.shape[0])
    cl = 0.5 * (_softmax_cross_entropy(sim, idx) + _softmax_cross_entropy(sim.T, idx))

    mean_embs = 0.5 * (p1 + p2)
    dist_logits = act(lin(mean_embs, params["dist_W"], params["dist_b"]))
    pop_loss = cl + _softmax_cross_entropy(dist_logits, final_boxes)
    out = act(lin(mean_embs, params["out_W"], params["out_b"]))
    return out, mean_embs, pop_loss


if __name__ == "__main__":
    N_SNAP, HIDDEN, BOX_COUNT = 8, 32, 5

    key = jax.random.PRNGKey(0)
    k_g1, k_g2, k_lab, k_par = jax.random.split(key, 4)

    g1 = jax.random.normal(k_g1, (N_SNAP, HIDDEN), jnp.float32)
    g2 = jax.random.normal(k_g2, (N_SNAP, HIDDEN), jnp.float32)
    final_boxes = jax.random.randint(k_lab, (N_SNAP,), 0, BOX_COUNT)
    # avg_boxes / seqs / masks from `indicators` are unused by this forward path.

    params = init_params(k_par, HIDDEN, BOX_COUNT)

    # One-time weight preprocessing (pre-cast bf16, merged+padded head) — NOT
    # part of the per-call hot path.
    kparams = jax.block_until_ready(prepare_kernel_params(params))

    out, pop_embs, pop_loss = cl_accum_citation_pop_forward(
        kparams, g1, g2, final_boxes, box_count=BOX_COUNT)
    jax.block_until_ready((out, pop_embs, pop_loss))

    ref_out, ref_embs, ref_loss = reference_forward(params, g1, g2, final_boxes)
    # Tolerance covers bf16 MXU inputs (f32 accumulation) vs. the f32
    # Precision.HIGHEST reference.
    np.testing.assert_allclose(np.asarray(out), np.asarray(ref_out), rtol=2e-2, atol=2e-2)
    np.testing.assert_allclose(np.asarray(pop_embs), np.asarray(ref_embs), rtol=2e-2, atol=2e-2)
    np.testing.assert_allclose(np.asarray(pop_loss), np.asarray(ref_loss), rtol=2e-2, atol=2e-2)

    assert out.shape == (N_SNAP, 1) and pop_embs.shape == (N_SNAP, HIDDEN)
    print("KERNEL_OK")
</pallas_src>

<mosaic_0001>
module attributes {stable_mosaic.version = 11 : i64} {
  func.func @_fused_forward_kernel(%arg0: memref<16x32xf32, #tpu.memory_space<vmem>>, %arg1: memref<8x1xi32, #tpu.memory_space<vmem>>, %arg2: memref<32x32xbf16, #tpu.memory_space<vmem>>, %arg3: memref<1x32xf32, #tpu.memory_space<vmem>>, %arg4: memref<32x32xbf16, #tpu.memory_space<vmem>>, %arg5: memref<1x32xf32, #tpu.memory_space<vmem>>, %arg6: memref<32x32xbf16, #tpu.memory_space<vmem>>, %arg7: memref<1x32xf32, #tpu.memory_space<vmem>>, %arg8: memref<32x128xbf16, #tpu.memory_space<vmem>>, %arg9: memref<1x128xf32, #tpu.memory_space<vmem>>, %arg10: memref<8x32xf32, #tpu.memory_space<vmem>>, %arg11: memref<8x128xf32, #tpu.memory_space<vmem>>) attributes {dimension_semantics = [], scalar_prefetch = 0 : i64, scratch_operands = 0 : i64, tpu.core_type = #tpu.core_type<tc>} {
    %c0 = arith.constant 0 : index
    %c0_0 = arith.constant 0 : index
    %0 = vector.load %arg0[%c0, %c0_0] : memref<16x32xf32, #tpu.memory_space<vmem>>, vector<16x32xf32>
    %c0_1 = arith.constant 0 : index
    %c0_2 = arith.constant 0 : index
    %1 = vector.load %arg2[%c0_1, %c0_2] : memref<32x32xbf16, #tpu.memory_space<vmem>>, vector<32x32xbf16>
    %2 = arith.truncf %0 : vector<16x32xf32> to vector<16x32xbf16>
    %cst = arith.constant dense<0.000000e+00> : vector<16x32xf32>
    %3 = tpu.matmul %2, %1, %cst {dimension_numbers = #tpu.dot_dimension_numbers<[1], [0], [0], [1], [0, 0, 1, 1], [], []>} : vector<16x32xbf16>, vector<32x32xbf16>, vector<16x32xf32> -> vector<16x32xf32>
    %c0_3 = arith.constant 0 : index
    %c0_4 = arith.constant 0 : index
    %4 = vector.load %arg3[%c0_3, %c0_4] : memref<1x32xf32, #tpu.memory_space<vmem>>, vector<1x32xf32>
    %5 = vector.broadcast %4 : vector<1x32xf32> to vector<16x32xf32>
    %6 = arith.addf %3, %5 : vector<16x32xf32>
    %cst_5 = arith.constant 0.00999999977 : f32
    %7 = vector.broadcast %cst_5 : f32 to vector<16x32xf32>
    %8 = arith.mulf %7, %6 : vector<16x32xf32>
    %9 = arith.maximumf %6, %8 : vector<16x32xf32>
    %c0_6 = arith.constant 0 : index
    %c0_7 = arith.constant 0 : index
    %10 = vector.load %arg4[%c0_6, %c0_7] : memref<32x32xbf16, #tpu.memory_space<vmem>>, vector<32x32xbf16>
    %11 = arith.truncf %9 : vector<16x32xf32> to vector<16x32xbf16>
    %cst_8 = arith.constant dense<0.000000e+00> : vector<16x32xf32>
    %12 = tpu.matmul %11, %10, %cst_8 {dimension_numbers = #tpu.dot_dimension_numbers<[1], [0], [0], [1], [0, 0, 1, 1], [], []>} : vector<16x32xbf16>, vector<32x32xbf16>, vector<16x32xf32> -> vector<16x32xf32>
    %c0_9 = arith.constant 0 : index
    %c0_10 = arith.constant 0 : index
    %13 = vector.load %arg5[%c0_9, %c0_10] : memref<1x32xf32, #tpu.memory_space<vmem>>, vector<1x32xf32>
    %14 = vector.broadcast %13 : vector<1x32xf32> to vector<16x32xf32>
    %15 = arith.addf %12, %14 : vector<16x32xf32>
    %cst_11 = arith.constant 0.000000e+00 : f32
    %16 = vector.broadcast %cst_11 : f32 to vector<16x32xf32>
    %17 = arith.maximumf %15, %16 : vector<16x32xf32>
    %c0_12 = arith.constant 0 : index
    %c0_13 = arith.constant 0 : index
    %18 = vector.load %arg6[%c0_12, %c0_13] : memref<32x32xbf16, #tpu.memory_space<vmem>>, vector<32x32xbf16>
    %19 = arith.truncf %17 : vector<16x32xf32> to vector<16x32xbf16>
    %cst_14 = arith.constant dense<0.000000e+00> : vector<16x32xf32>
    %20 = tpu.matmul %19, %18, %cst_14 {dimension_numbers = #tpu.dot_dimension_numbers<[1], [0], [0], [1], [0, 0, 1, 1], [], []>} : vector<16x32xbf16>, vector<32x32xbf16>, vector<16x32xf32> -> vector<16x32xf32>
    %c0_15 = arith.constant 0 : index
    %c0_16 = arith.constant 0 : index
    %21 = vector.load %arg7[%c0_15, %c0_16] : memref<1x32xf32, #tpu.memory_space<vmem>>, vector<1x32xf32>
    %22 = vector.broadcast %21 : vector<1x32xf32> to vector<16x32xf32>
    %23 = arith.addf %20, %22 : vector<16x32xf32>
    %24 = vector.extract_strided_slice %23 {offsets = [0, 0], sizes = [8, 32], strides = [1, 1]} : vector<16x32xf32> to vector<8x32xf32>
    %25 = vector.extract_strided_slice %23 {offsets = [8, 0], sizes = [8, 32], strides = [1, 1]} : vector<16x32xf32> to vector<8x32xf32>
    %26 = arith.mulf %24, %24 : vector<8x32xf32>
    %cst_17 = arith.constant dense<0.000000e+00> : vector<8xf32>
    %27 = vector.multi_reduction <add>, %26, %cst_17 [1] : vector<8x32xf32> to vector<8xf32>
    %28 = vector.shape_cast %27 : vector<8xf32> to vector<8x1xf32>
    %cst_18 = arith.constant 9.99999996E-13 : f32
    %29 = vector.broadcast %cst_18 : f32 to vector<8x1xf32>
    %30 = arith.addf %28, %29 : vector<8x1xf32>
    %31 = math.rsqrt %30 : vector<8x1xf32>
    %32 = vector.broadcast %31 : vector<8x1xf32> to vector<8x32xf32>
    %33 = arith.mulf %24, %32 : vector<8x32xf32>
    %34 = arith.mulf %25, %25 : vector<8x32xf32>
    %cst_19 = arith.constant dense<0.000000e+00> : vector<8xf32>
    %35 = vector.multi_reduction <add>, %34, %cst_19 [1] : vector<8x32xf32> to vector<8xf32>
    %36 = vector.shape_cast %35 : vector<8xf32> to vector<8x1xf32>
    %cst_20 = arith.constant 9.99999996E-13 : f32
    %37 = vector.broadcast %cst_20 : f32 to vector<8x1xf32>
    %38 = arith.addf %36, %37 : vector<8x1xf32>
    %39 = math.rsqrt %38 : vector<8x1xf32>
    %40 = vector.broadcast %39 : vector<8x1xf32> to vector<8x32xf32>
    %41 = arith.mulf %25, %40 : vector<8x32xf32>
    %cst_21 = arith.constant dense<0.000000e+00> : vector<8x8xf32>
    %42 = tpu.matmul %33, %41, %cst_21 {dimension_numbers = #tpu.dot_dimension_numbers<[1], [1], [0], [0], [0, 0, 1, 0], [], []>} : vector<8x32xf32>, vector<8x32xf32>, vector<8x8xf32> -> vector<8x8xf32>
    %cst_22 = arith.constant 5.000000e+00 : f32
    %43 = vector.broadcast %cst_22 : f32 to vector<8x8xf32>
    %44 = arith.mulf %42, %43 : vector<8x8xf32>
    %45 = tpu.iota {dimensions = array<i32: 0>} : vector<8x8xi32>
    %46 = tpu.iota {dimensions = array<i32: 1>} : vector<8x8xi32>
    %47 = arith.cmpi eq, %45, %46 : vector<8x8xi32>
    %cst_23 = arith.constant 0.000000e+00 : f32
    %48 = vector.broadcast %cst_23 : f32 to vector<8x8xf32>
    %49 = arith.select %47, %44, %48 : vector<8x8xi1>, vector<8x8xf32>
    %cst_24 = arith.constant dense<0.000000e+00> : vector<8xf32>
    %50 = vector.multi_reduction <add>, %49, %cst_24 [1] : vector<8x8xf32> to vector<8xf32>
    %51 = vector.shape_cast %50 : vector<8xf32> to vector<8x1xf32>
    %cst_25 = arith.constant dense<0xFF800000> : vector<8xf32>
    %52 = vector.multi_reduction <maximumf>, %44, %cst_25 [1] : vector<8x8xf32> to vector<8xf32>
    %53 = vector.shape_cast %52 : vector<8xf32> to vector<8x1xf32>
    %54 = vector.broadcast %53 : vector<8x1xf32> to vector<8x8xf32>
    %55 = arith.subf %44, %54 : vector<8x8xf32>
    %56 = math.exp %55 : vector<8x8xf32>
    %cst_26 = arith.constant dense<0.000000e+00> : vector<8xf32>
    %57 = vector.multi_reduction <add>, %56, %cst_26 [1] : vector<8x8xf32> to vector<8xf32>
    %58 = vector.shape_cast %57 : vector<8xf32> to vector<8x1xf32>
    %59 = math.log %58 : vector<8x1xf32>
    %60 = arith.addf %53, %59 : vector<8x1xf32>
    %cst_27 = arith.constant dense<0xFF800000> : vector<8xf32>
    %61 = vector.multi_reduction <maximumf>, %44, %cst_27 [0] : vector<8x8xf32> to vector<8xf32>
    %62 = vector.shape_cast %61 : vector<8xf32> to vector<1x8xf32>
    %63 = vector.broadcast %62 : vector<1x8xf32> to vector<8x8xf32>
    %64 = arith.subf %44, %63 : vector<8x8xf32>
    %65 = math.exp %64 : vector<8x8xf32>
    %cst_28 = arith.constant dense<0.000000e+00> : vector<8xf32>
    %66 = vector.multi_reduction <add>, %65, %cst_28 [0] : vector<8x8xf32> to vector<8xf32>
    %67 = vector.shape_cast %66 : vector<8xf32> to vector<1x8xf32>
    %68 = math.log %67 : vector<1x8xf32>
    %69 = arith.addf %62, %68 : vector<1x8xf32>
    %70 = vector.shape_cast %60 : vector<8x1xf32> to vector<1x8x1xf32>
    %cst_29 = arith.constant dense<0.000000e+00> : vector<1xf32>
    %71 = vector.multi_reduction <add>, %70, %cst_29 [1, 2] : vector<1x8x1xf32> to vector<1xf32>
    %72 = vector.shape_cast %71 : vector<1xf32> to vector<1x1x1xf32>
    %73 = vector.extract %72[0, 0, 0] : f32 from vector<1x1x1xf32>
    %cst_30 = arith.constant 8.000000e+00 : f32
    %74 = arith.divf %73, %cst_30 : f32
    %75 = vector.shape_cast %69 : vector<1x8xf32> to vector<1x1x8xf32>
    %cst_31 = arith.constant dense<0.000000e+00> : vector<1xf32>
    %76 = vector.multi_reduction <add>, %75, %cst_31 [1, 2] : vector<1x1x8xf32> to vector<1xf32>
    %77 = vector.shape_cast %76 : vector<1xf32> to vector<1x1x1xf32>
    %78 = vector.extract %77[0, 0, 0] : f32 from vector<1x1x1xf32>
    %cst_32 = arith.constant 8.000000e+00 : f32
    %79 = arith.divf %78, %cst_32 : f32
    %80 = arith.addf %74, %79 : f32
    %cst_33 = arith.constant 5.000000e-01 : f32
    %81 = arith.mulf %cst_33, %80 : f32
    %82 = vector.shape_cast %51 : vector<8x1xf32> to vector<1x8x1xf32>
    %cst_34 = arith.constant dense<0.000000e+00> : vector<1xf32>
    %83 = vector.multi_reduction <add>, %82, %cst_34 [1, 2] : vector<1x8x1xf32> to vector<1xf32>
    %84 = vector.shape_cast %83 : vector<1xf32> to vector<1x1x1xf32>
    %85 = vector.extract %84[0, 0, 0] : f32 from vector<1x1x1xf32>
    %cst_35 = arith.constant 8.000000e+00 : f32
    %86 = arith.divf %85, %cst_35 : f32
    %87 = arith.subf %81, %86 : f32
    %88 = vector.extract_strided_slice %9 {offsets = [0, 0], sizes = [8, 32], strides = [1, 1]} : vector<16x32xf32> to vector<8x32xf32>
    %89 = vector.extract_strided_slice %9 {offsets = [8, 0], sizes = [8, 32], strides = [1, 1]} : vector<16x32xf32> to vector<8x32xf32>
    %90 = arith.addf %88, %89 : vector<8x32xf32>
    %cst_36 = arith.constant 5.000000e-01 : f32
    %91 = vector.broadcast %cst_36 : f32 to vector<8x32xf32>
    %92 = arith.mulf %91, %90 : vector<8x32xf32>
    %c0_37 = arith.constant 0 : index
    %c0_38 = arith.constant 0 : index
    %93 = vector.load %arg8[%c0_37, %c0_38] : memref<32x128xbf16, #tpu.memory_space<vmem>>, vector<32x128xbf16>
    %94 = arith.truncf %92 : vector<8x32xf32> to vector<8x32xbf16>
    %cst_39 = arith.constant dense<0.000000e+00> : vector<8x128xf32>
    %95 = tpu.matmul %94, %93, %cst_39 {dimension_numbers = #tpu.dot_dimension_numbers<[1], [0], [0], [1], [0, 0, 1, 1], [], []>} : vector<8x32xbf16>, vector<32x128xbf16>, vector<8x128xf32> -> vector<8x128xf32>
    %c0_40 = arith.constant 0 : index
    %c0_41 = arith.constant 0 : index
    %96 = vector.load %arg9[%c0_40, %c0_41] : memref<1x128xf32, #tpu.memory_space<vmem>>, vector<1x128xf32>
    %97 = vector.broadcast %96 : vector<1x128xf32> to vector<8x128xf32>
    %98 = arith.addf %95, %97 : vector<8x128xf32>
    %cst_42 = arith.constant 0.00999999977 : f32
    %99 = vector.broadcast %cst_42 : f32 to vector<8x128xf32>
    %100 = arith.mulf %99, %98 : vector<8x128xf32>
    %101 = arith.maximumf %98, %100 : vector<8x128xf32>
    %102 = vector.extract_strided_slice %101 {offsets = [0, 0], sizes = [8, 5], strides = [1, 1]} : vector<8x128xf32> to vector<8x5xf32>
    %c0_43 = arith.constant 0 : index
    %c0_44 = arith.constant 0 : index
    %103 = vector.load %arg1[%c0_43, %c0_44] : memref<8x1xi32, #tpu.memory_space<vmem>>, vector<8x1xi32>
    %104 = tpu.iota {dimensions = array<i32: 1>} : vector<8x5xi32>
    %105 = vector.broadcast %103 : vector<8x1xi32> to vector<8x5xi32>
    %106 = arith.cmpi eq, %105, %104 : vector<8x5xi32>
    %107 = arith.extui %106 : vector<8x5xi1> to vector<8x5xi32>
    %108 = arith.sitofp %107 : vector<8x5xi32> to vector<8x5xf32>
    %109 = arith.mulf %108, %102 : vector<8x5xf32>
    %cst_45 = arith.constant dense<0.000000e+00> : vector<8xf32>
    %110 = vector.multi_reduction <add>, %109, %cst_45 [1] : vector<8x5xf32> to vector<8xf32>
    %111 = vector.shape_cast %110 : vector<8xf32> to vector<8x1xf32>
    %cst_46 = arith.constant dense<0xFF800000> : vector<8xf32>
    %112 = vector.multi_reduction <maximumf>, %102, %cst_46 [1] : vector<8x5xf32> to vector<8xf32>
    %113 = vector.shape_cast %112 : vector<8xf32> to vector<8x1xf32>
    %114 = vector.broadcast %113 : vector<8x1xf32> to vector<8x5xf32>
    %115 = arith.subf %102, %114 : vector<8x5xf32>
    %116 = math.exp %115 : vector<8x5xf32>
    %cst_47 = arith.constant dense<0.000000e+00> : vector<8xf32>
    %117 = vector.multi_reduction <add>, %116, %cst_47 [1] : vector<8x5xf32> to vector<8xf32>
    %118 = vector.shape_cast %117 : vector<8xf32> to vector<8x1xf32>
    %119 = math.log %118 : vector<8x1xf32>
    %120 = arith.addf %113, %119 : vector<8x1xf32>
    %121 = arith.subf %120, %111 : vector<8x1xf32>
    %122 = vector.shape_cast %121 : vector<8x1xf32> to vector<1x8x1xf32>
    %cst_48 = arith.constant dense<0.000000e+00> : vector<1xf32>
    %123 = vector.multi_reduction <add>, %122, %cst_48 [1, 2] : vector<1x8x1xf32> to vector<1xf32>
    %124 = vector.shape_cast %123 : vector<1xf32> to vector<1x1x1xf32>
    %125 = vector.extract %124[0, 0, 0] : f32 from vector<1x1x1xf32>
    %cst_49 = arith.constant 8.000000e+00 : f32
    %126 = arith.divf %125, %cst_49 : f32
    %127 = arith.addf %87, %126 : f32
    %128 = tpu.iota {dimensions = array<i32: 0>} : vector<8x128xi32>
    %129 = tpu.iota {dimensions = array<i32: 1>} : vector<8x128xi32>
    %c0_i32 = arith.constant 0 : i32
    %130 = vector.broadcast %c0_i32 : i32 to vector<8x128xi32>
    %131 = arith.cmpi eq, %128, %130 : vector<8x128xi32>
    %c6_i32 = arith.constant 6 : i32
    %132 = vector.broadcast %c6_i32 : i32 to vector<8x128xi32>
    %133 = arith.cmpi eq, %129, %132 : vector<8x128xi32>
    %134 = arith.andi %131, %133 : vector<8x128xi1>
    %135 = vector.broadcast %127 : f32 to vector<8x128xf32>
    %136 = arith.select %134, %135, %101 : vector<8x128xi1>, vector<8x128xf32>
    %c0_50 = arith.constant 0 : index
    %c0_51 = arith.constant 0 : index
    %137 = vector.load %arg10[%c0_50, %c0_51] : memref<8x32xf32, #tpu.memory_space<vmem>>, vector<8x32xf32>
    tpu.vector_store %arg10[%c0_50, %c0_51], %92 {strides = array<i32>} : memref<8x32xf32, #tpu.memory_space<vmem>>, vector<8x32xf32>,
    %c0_52 = arith.constant 0 : index
    %c0_53 = arith.constant 0 : index
    %138 = vector.load %arg11[%c0_52, %c0_53] : memref<8x128xf32, #tpu.memory_space<vmem>>, vector<8x128xf32>
    tpu.vector_store %arg11[%c0_52, %c0_53], %136 {strides = array<i32>} : memref<8x128xf32, #tpu.memory_space<vmem>>, vector<8x128xf32>,
    return
  }
}

</mosaic_0001>

<llo_original>
// kernel: cl_accum_citation_pop_forward.1
$region0: #{cl_accum_citation_pop_forward.1}
  #allocation0 [shape = 'u32[]', space=smem, size = 0x4, offset = 0x4, fixed_abs, tag = 'smem constant byte address 0x4 - core index']
  #allocation1 [shape = 'u32[144,128]{1,0:T(1,128)}', space=vmem, size = 0x12000, scoped, tag = 'internal scratch']
  %s0 = inlined_call_operand.vmem [shape: f32[16,32], index: 0, kind: input, shape index: {}]
  %s1 = inlined_call_operand.vmem [shape: s32[8,1], index: 1, kind: input, shape index: {}]
  %s2 = inlined_call_operand.vmem [shape: bf16[32,32], index: 2, kind: input, shape index: {}]
  %s3 = inlined_call_operand.hbm [shape: f32[1,32], index: 3, kind: input, shape index: {}]
  %s4 = inlined_call_operand.vmem [shape: bf16[32,32], index: 4, kind: input, shape index: {}]
  %s5 = inlined_call_operand.hbm [shape: f32[1,32], index: 5, kind: input, shape index: {}]
  %s6 = inlined_call_operand.vmem [shape: bf16[32,32], index: 6, kind: input, shape index: {}]
  %s7 = inlined_call_operand.hbm [shape: f32[1,32], index: 7, kind: input, shape index: {}]
  %s8 = inlined_call_operand.hbm [shape: bf16[32,128], index: 8, kind: input, shape index: {}]
  %s9 = inlined_call_operand.hbm [shape: f32[1,128], index: 9, kind: input, shape index: {}]
  %s10 = inlined_call_operand.hbm [shape: f32[8,32], index: 10, kind: output, shape index: {0}]
  %s11 = inlined_call_operand.vmem [shape: f32[8,128], index: 11, kind: output, shape index: {1}]
  %12 = xla_tuple %s10, %s11
  %s13 = sld [smem:[#allocation0]]
  $region78: #{cl_accum_citation_pop_forward.1} parent=0
    _
  %s15 = ssub.s32 1, %s13
  %s16 = scalar_select 0, %s15, %s13
  $region1: #{cl_accum_citation_pop_forward.1} parent=0
    #allocation2 [shape = 'u8[512]{0}', space=vmem, size = 0x400, scoped, tag = 'input window, operand 3, single buffered']
    #allocation3 [shape = 's32[1]{0}', space=sflag, size = 0x4, scoped, tag = 'scoped memory for cl_accum_citation_pop_forward.1']
    #allocation4 [shape = 's32[1]{0}', space=sflag, size = 0x4, scoped, tag = 'scoped memory for cl_accum_citation_pop_forward.1']
    #allocation5 [shape = 'u8[512]{0}', space=vmem, size = 0x400, scoped, tag = 'input window, operand 5, single buffered']
    #allocation6 [shape = 's32[1]{0}', space=sflag, size = 0x4, scoped, tag = 'scoped memory for cl_accum_citation_pop_forward.1']
    #allocation7 [shape = 'u8[512]{0}', space=vmem, size = 0x400, scoped, tag = 'input window, operand 7, single buffered']
    #allocation8 [shape = 'u8[8192]{0}', space=vmem, size = 0x2000, scoped, tag = 'input window, operand 8, single buffered']
    #allocation9 [shape = 's32[1]{0}', space=sflag, size = 0x4, scoped, tag = 'scoped memory for cl_accum_citation_pop_forward.1']
    #allocation10 [shape = 'u8[512]{0}', space=vmem, size = 0x400, scoped, tag = 'input window, operand 9, single buffered']
    #allocation11 [shape = 'u8[4096]{0}', space=vmem, size = 0x1000, scoped, tag = 'output window, operand 0, single buffered']
    %17 = vsyncpa [#allocation3], 0
    %18 = vsyncpa [#allocation6], 0
    %19 = vsyncpa [#allocation9], 0
    %20 = vsyncpa [#allocation4], 0
    // Predicated region
    $region2: #{cl_accum_citation_pop_forward.1} parent=1 // pred_check
      _
    $region3: #{cl_accum_citation_pop_forward.1} parent=1 // pred_check_branch
      %22 = sbr.rel (0) target = $region5
    $region4: #{cl_accum_citation_pop_forward.1} parent=1 // pred_region
      _
    $region5: #{cl_accum_citation_pop_forward.1} parent=1 // pred_fallthru
      _
    // Predicated region
    $region6: #{cl_accum_citation_pop_forward.1} parent=1 // pred_check
      _
    $region7: #{cl_accum_citation_pop_forward.1} parent=1 // pred_check_branch
      %24 = sbr.rel (0) target = $region9
    $region8: #{cl_accum_citation_pop_forward.1} parent=1 // pred_region
      _
    $region9: #{cl_accum_citation_pop_forward.1} parent=1 // pred_fallthru
      _
    // Predicated region
    $region10: #{cl_accum_citation_pop_forward.1} parent=1 // pred_check
      _
    $region11: #{cl_accum_citation_pop_forward.1} parent=1 // pred_check_branch
      %26 = sbr.rel (0) target = $region13
    $region12: #{cl_accum_citation_pop_forward.1} parent=1 // pred_region
      _
    $region13: #{cl_accum_citation_pop_forward.1} parent=1 // pred_fallthru
      _
    // Predicated region
    $region14: #{cl_accum_citation_pop_forward.1} parent=1 // pred_check
      _
    $region15: #{cl_accum_citation_pop_forward.1} parent=1 // pred_check_branch
      %28 = sbr.rel (0) target = $region17
    $region16: #{cl_accum_citation_pop_forward.1} parent=1 // pred_region
      %s30 = ssub.s32 16, 16
      %31 = vsyncadd [#allocation3], %s30
      %s33 = sshll.u32 [#allocation2], 4
      %s34 = int_to_ptr.vmem [resolvable:$true] %s33
      %36 = dma.hbm_to_vmem [thread:$0]  %s3, 16, %s34, [#allocation3]
    $region17: #{cl_accum_citation_pop_forward.1} parent=1 // pred_fallthru
      _
    // Predicated region
    $region18: #{cl_accum_citation_pop_forward.1} parent=1 // pred_check
      _
    $region19: #{cl_accum_citation_pop_forward.1} parent=1 // pred_check_branch
      %38 = sbr.rel (0) target = $region21
    $region20: #{cl_accum_citation_pop_forward.1} parent=1 // pred_region
      _
    $region21: #{cl_accum_citation_pop_forward.1} parent=1 // pred_fallthru
      _
    // Predicated region
    $region22: #{cl_accum_citation_pop_forward.1} parent=1 // pred_check
      _
    $region23: #{cl_accum_citation_pop_forward.1} parent=1 // pred_check_branch
      %40 = sbr.rel (0) target = $region25
    $region24: #{cl_accum_citation_pop_forward.1} parent=1 // pred_region
      %s42 = ssub.s32 16, 16
      %43 = vsyncadd [#allocation6], %s42
      %s45 = sshll.u32 [#allocation5], 4
      %s46 = int_to_ptr.vmem [resolvable:$true] %s45
      %48 = dma.hbm_to_vmem [thread:$0]  %s5, 16, %s46, [#allocation6]
    $region25: #{cl_accum_citation_pop_forward.1} parent=1 // pred_fallthru
      _
    // Predicated region
    $region26: #{cl_accum_citation_pop_forward.1} parent=1 // pred_check
      _
    $region27: #{cl_accum_citation_pop_forward.1} parent=1 // pred_check_branch
      %50 = sbr.rel (0) target = $region29
    $region28: #{cl_accum_citation_pop_forward.1} parent=1 // pred_region
      _
    $region29: #{cl_accum_citation_pop_forward.1} parent=1 // pred_fallthru
      _
    // Predicated region
    $region30: #{cl_accum_citation_pop_forward.1} parent=1 // pred_check
      _
    $region31: #{cl_accum_citation_pop_forward.1} parent=1 // pred_check_branch
      %52 = sbr.rel (0) target = $region33
    $region32: #{cl_accum_citation_pop_forward.1} parent=1 // pred_region
      %s54 = ssub.s32 16, 16
      %55 = vsyncadd [#allocation6], %s54
      %s57 = sshll.u32 [#allocation7], 4
      %s58 = int_to_ptr.vmem [resolvable:$true] %s57
      %60 = dma.hbm_to_vmem [thread:$0]  %s7, 16, %s58, [#allocation6]
    $region33: #{cl_accum_citation_pop_forward.1} parent=1 // pred_fallthru
      _
    // Predicated region
    $region34: #{cl_accum_citation_pop_forward.1} parent=1 // pred_check
      _
    $region35: #{cl_accum_citation_pop_forward.1} parent=1 // pred_check_branch
      %62 = sbr.rel (0) target = $region37
    $region36: #{cl_accum_citation_pop_forward.1} parent=1 // pred_region
      %s64 = ssub.s32 256, 256
      %65 = vsyncadd [#allocation9], %s64
      %s66 = sshll.u32 [#allocation8], 4
      %s67 = int_to_ptr.vmem [resolvable:$true] %s66
      %72 = dma.hbm_to_vmem [thread:$0]  %s8, 256, %s67, [#allocation9], 64, 64, 4
    $region37: #{cl_accum_citation_pop_forward.1} parent=1 // pred_fallthru
      _
    // Predicated region
    $region38: #{cl_accum_citation_pop_forward.1} parent=1 // pred_check
      _
    $region39: #{cl_accum_citation_pop_forward.1} parent=1 // pred_check_branch
      %74 = sbr.rel (0) target = $region41
    $region40: #{cl_accum_citation_pop_forward.1} parent=1 // pred_region
      %s76 = ssub.s32 16, 16
      %77 = vsyncadd [#allocation9], %s76
      %s79 = sshll.u32 [#allocation10], 4
      %s80 = int_to_ptr.vmem [resolvable:$true] %s79
      %82 = dma.hbm_to_vmem [thread:$0]  %s9, 16, %s80, [#allocation9]
    $region41: #{cl_accum_citation_pop_forward.1} parent=1 // pred_fallthru
      _
    // Predicated region
    $region42: #{cl_accum_citation_pop_forward.1} parent=1 // pred_check
      _
    $region43: #{cl_accum_citation_pop_forward.1} parent=1 // pred_check_branch
      %84 = sbr.rel (0) target = $region45
    $region44: #{cl_accum_citation_pop_forward.1} parent=1 // pred_region
      %85 = dma.done [#allocation3], 16
    $region45: #{cl_accum_citation_pop_forward.1} parent=1 // pred_fallthru
      _
    // Predicated region
    $region46: #{cl_accum_citation_pop_forward.1} parent=1 // pred_check
      _
    $region47: #{cl_accum_citation_pop_forward.1} parent=1 // pred_check_branch
      %87 = sbr.rel (0) target = $region49
    $region48: #{cl_accum_citation_pop_forward.1} parent=1 // pred_region
      %88 = dma.done [#allocation6], 16
    $region49: #{cl_accum_citation_pop_forward.1} parent=1 // pred_fallthru
      _
    // Predicated region
    $region50: #{cl_accum_citation_pop_forward.1} parent=1 // pred_check
      _
    $region51: #{cl_accum_citation_pop_forward.1} parent=1 // pred_check_branch
      %90 = sbr.rel (0) target = $region53
    $region52: #{cl_accum_citation_pop_forward.1} parent=1 // pred_region
      %91 = dma.done [#allocation6], 16
    $region53: #{cl_accum_citation_pop_forward.1} parent=1 // pred_fallthru
      _
    // Predicated region
    $region54: #{cl_accum_citation_pop_forward.1} parent=1 // pred_check
      _
    $region55: #{cl_accum_citation_pop_forward.1} parent=1 // pred_check_branch
      %93 = sbr.rel (0) target = $region57
    $region56: #{cl_accum_citation_pop_forward.1} parent=1 // pred_region
      %94 = dma.done [#allocation9], 256
    $region57: #{cl_accum_citation_pop_forward.1} parent=1 // pred_fallthru
      _
    // Predicated region
    $region58: #{cl_accum_citation_pop_forward.1} parent=1 // pred_check
      _
    $region59: #{cl_accum_citation_pop_forward.1} parent=1 // pred_check_branch
      %96 = sbr.rel (0) target = $region61
    $region60: #{cl_accum_citation_pop_forward.1} parent=1 // pred_region
      %97 = dma.done [#allocation9], 16
    $region61: #{cl_accum_citation_pop_forward.1} parent=1 // pred_fallthru
      _
    %v99 = vld [vmem:[%s0] sm:$0xff]
    %v100 = vld [vmem:[%s0 + $0x8] sm:$0xff]
    %v101 = vld [vmem:[%s2] sm:$0xf]
    %v102 = vld [vmem:[%s2 + $0x4] sm:$0xf]
    %v103 = vld [vmem:[%s2 + $0x8] sm:$0xf]
    %v104 = vld [vmem:[%s2 + $0xc] sm:$0xf]
    %v105 = vpack.c.bf16 %v100, %v99
    %v106 = vld [vmem:[#allocation2] sm:$0x1]
    %v108 = vlaneseq
    %v109 = vshrl.u32 %v108, 7
    %v110 = vsub.s32 0, %v109
    %v111 = vrot.slane %v106, %v110
    %v117 = vunpack.c.l.b16 %v101
    %v118 = vunpack.c.l.b16 %v102
    %v119 = vunpack.c.l.b16 %v103
    %v120 = vunpack.c.l.b16 %v104
    %v121 = vpack.c.b16 %v118, %v117
    %v122 = vpack.c.b16 %v120, %v119
    %vm125 = vcmask 261120
    %v127 = vsel %vm125, %v105, 0
    %129 = vmatprep.subr.bf16.mxu0 0
    %130 = vmatpush1.bf16.msra.mxu0 0
    %131 = vmatprep.subr.bf16.mxu0 0
    %132 = vmatpush1.bf16.msra.mxu0 0
    %133 = vmatprep.subr.bf16.mxu0 0
    %134 = vmatpush1.bf16.msra.mxu0 0
    %135 = vmatprep.subr.bf16.mxu0 0
    %136 = vmatpush1.bf16.msra.mxu0 0
    %137 = vmatprep.subr.bf16.mxu0 0
    %138 = vmatpush1.bf16.msra.mxu0 0
    %139 = vmatprep.subr.bf16.mxu0 0
    %140 = vmatpush1.bf16.msra.mxu0 0
    %141 = vmatprep.subr.bf16.mxu0 0
    %142 = vmatpush1.bf16.msra.mxu0 %v122
    %143 = vmatprep.subr.bf16.mxu0 0
    %144 = vmatpush1.bf16.msra.mxu0 %v121
    %145 = vmatprep.subr.bf16.mxu0 0
    %146 = vmatpush2.bf16.msra.mxu0 0
    %147 = vmatprep.subr.bf16.mxu0 0
    %148 = vmatpush2.bf16.msra.mxu0 0
    %149 = vmatprep.subr.bf16.mxu0 0
    %150 = vmatpush2.bf16.msra.mxu0 0
    %151 = vmatprep.subr.bf16.mxu0 0
    %152 = vmatpush2.bf16.msra.mxu0 0
    %153 = vmatprep.subr.bf16.mxu0 0
    %154 = vmatpush2.bf16.msra.mxu0 0
    %155 = vmatprep.subr.bf16.mxu0 0
    %156 = vmatpush2.bf16.msra.mxu0 0
    %157 = vmatprep.subr.bf16.mxu0 0
    %158 = vmatpush2.bf16.msra.mxu0 0
    %159 = vmatprep.subr.bf16.mxu0 0
    %160 = vmatpush2.bf16.msra.mxu0 0
    %161 = vmatprep.mubr.bf16.mxu0 0
    %162 = vmatmul.mubr.bf16.gmra.mxu0 %v127
    %v163 = vpop.f32.mrf.mxu0
    %v164 = vadd.f32 %v111, %v163
    %v165 = vpop.f32.mrf.mxu0
    %v166 = vpop.f32.mrf.mxu0
    %v167 = vadd.f32 %v111, %v166
    %v168 = vpop.f32.mrf.mxu0
    %169 = vdwg.mxu0
    %v170 = vmul.f32 %v164, 0.01
    %v171 = vmul.f32 %v167, 0.01
    %v172 = vmax.f32 %v164, %v170
    %v173 = vmax.f32 %v167, %v171
    %v174 = vld [vmem:[%s4] sm:$0xf]
    %v175 = vld [vmem:[%s4 + $0x4] sm:$0xf]
    %v176 = vld [vmem:[%s4 + $0x8] sm:$0xf]
    %v177 = vld [vmem:[%s4 + $0xc] sm:$0xf]
    %v178 = vpack.c.bf16 %v173, %v172
    %v179 = vld [vmem:[#allocation5] sm:$0x1]
    %v181 = vlaneseq
    %v182 = vshrl.u32 %v181, 7
    %v183 = vsub.s32 0, %v182
    %v184 = vrot.slane %v179, %v183
    %v190 = vunpack.c.l.b16 %v174
    %v191 = vunpack.c.l.b16 %v175
    %v192 = vunpack.c.l.b16 %v176
    %v193 = vunpack.c.l.b16 %v177
    %v194 = vpack.c.b16 %v191, %v190
    %v195 = vpack.c.b16 %v193, %v192
    %v199 = vsel %vm125, %v178, 0
    %201 = vmatprep.subr.bf16.mxu0 0
    %202 = vmatpush1.bf16.msra.mxu0 0
    %203 = vmatprep.subr.bf16.mxu0 0
    %204 = vmatpush1.bf16.msra.mxu0 0
    %205 = vmatprep.subr.bf16.mxu0 0
    %206 = vmatpush1.bf16.msra.mxu0 0
    %207 = vmatprep.subr.bf16.mxu0 0
    %208 = vmatpush1.bf16.msra.mxu0 0
    %209 = vmatprep.subr.bf16.mxu0 0
    %210 = vmatpush1.bf16.msra.mxu0 0
    %211 = vmatprep.subr.bf16.mxu0 0
    %212 = vmatpush1.bf16.msra.mxu0 0
    %213 = vmatprep.subr.bf16.mxu0 0
    %214 = vmatpush1.bf16.msra.mxu0 %v195
    %215 = vmatprep.subr.bf16.mxu0 0
    %216 = vmatpush1.bf16.msra.mxu0 %v194
    %217 = vmatprep.subr.bf16.mxu0 0
    %218 = vmatpush2.bf16.msra.mxu0 0
    %219 = vmatprep.subr.bf16.mxu0 0
    %220 = vmatpush2.bf16.msra.mxu0 0
    %221 = vmatprep.subr.bf16.mxu0 0
    %222 = vmatpush2.bf16.msra.mxu0 0
    %223 = vmatprep.subr.bf16.mxu0 0
    %224 = vmatpush2.bf16.msra.mxu0 0
    %225 = vmatprep.subr.bf16.mxu0 0
    %226 = vmatpush2.bf16.msra.mxu0 0
    %227 = vmatprep.subr.bf16.mxu0 0
    %228 = vmatpush2.bf16.msra.mxu0 0
    %229 = vmatprep.subr.bf16.mxu0 0
    %230 = vmatpush2.bf16.msra.mxu0 0
    %231 = vmatprep.subr.bf16.mxu0 0
    %232 = vmatpush2.bf16.msra.mxu0 0
    %233 = vmatprep.mubr.bf16.mxu0 0
    %234 = vmatmul.mubr.bf16.gmra.mxu0 %v199
    %v235 = vpop.f32.mrf.mxu0
    %v236 = vadd.f32 %v184, %v235
    %v237 = vpop.f32.mrf.mxu0
    %v238 = vpop.f32.mrf.mxu0
    %v239 = vadd.f32 %v184, %v238
    %v240 = vpop.f32.mrf.mxu0
    %241 = vdwg.mxu0
    %v242 = vmax.f32 %v236, 0.0
    %v243 = vmax.f32 %v239, 0.0
    %v244 = vld [vmem:[%s6] sm:$0xf]
    %v245 = vld [vmem:[%s6 + $0x4] sm:$0xf]
    %v246 = vld [vmem:[%s6 + $0x8] sm:$0xf]
    %v247 = vld [vmem:[%s6 + $0xc] sm:$0xf]
    %v248 = vpack.c.bf16 %v243, %v242
    %v249 = vld [vmem:[#allocation7] sm:$0x1]
    %v251 = vlaneseq
    %v252 = vshrl.u32 %v251, 7
    %v253 = vsub.s32 0, %v252
    %v254 = vrot.slane %v249, %v253
    %v260 = vunpack.c.l.b16 %v244
    %v261 = vunpack.c.l.b16 %v245
    %v262 = vunpack.c.l.b16 %v246
    %v263 = vunpack.c.l.b16 %v247
    %v264 = vpack.c.b16 %v261, %v260
    %v265 = vpack.c.b16 %v263, %v262
    %v269 = vsel %vm125, %v248, 0
    %271 = vmatprep.subr.bf16.mxu0 0
    %272 = vmatpush1.bf16.msra.mxu0 0
    %273 = vmatprep.subr.bf16.mxu0 0
    %274 = vmatpush1.bf16.msra.mxu0 0
    %275 = vmatprep.subr.bf16.mxu0 0
    %276 = vmatpush1.bf16.msra.mxu0 0
    %277 = vmatprep.subr.bf16.mxu0 0
    %278 = vmatpush1.bf16.msra.mxu0 0
    %279 = vmatprep.subr.bf16.mxu0 0
    %280 = vmatpush1.bf16.msra.mxu0 0
    %281 = vmatprep.subr.bf16.mxu0 0
    %282 = vmatpush1.bf16.msra.mxu0 0
    %283 = vmatprep.subr.bf16.mxu0 0
    %284 = vmatpush1.bf16.msra.mxu0 %v265
    %285 = vmatprep.subr.bf16.mxu0 0
    %286 = vmatpush1.bf16.msra.mxu0 %v264
    %287 = vmatprep.subr.bf16.mxu0 0
    %288 = vmatpush2.bf16.msra.mxu0 0
    %289 = vmatprep.subr.bf16.mxu0 0
    %290 = vmatpush2.bf16.msra.mxu0 0
    %291 = vmatprep.subr.bf16.mxu0 0
    %292 = vmatpush2.bf16.msra.mxu0 0
    %293 = vmatprep.subr.bf16.mxu0 0
    %294 = vmatpush2.bf16.msra.mxu0 0
    %295 = vmatprep.subr.bf16.mxu0 0
    %296 = vmatpush2.bf16.msra.mxu0 0
    %297 = vmatprep.subr.bf16.mxu0 0
    %298 = vmatpush2.bf16.msra.mxu0 0
    %299 = vmatprep.subr.bf16.mxu0 0
    %300 = vmatpush2.bf16.msra.mxu0 0
    %301 = vmatprep.subr.bf16.mxu0 0
    %302 = vmatpush2.bf16.msra.mxu0 0
    %303 = vmatprep.mubr.bf16.mxu0 0
    %304 = vmatmul.mubr.bf16.gmra.mxu0 %v269
    %v305 = vpop.f32.mrf.mxu0
    %v306 = vadd.f32 %v254, %v305
    %v307 = vpop.f32.mrf.mxu0
    %v308 = vpop.f32.mrf.mxu0
    %v309 = vadd.f32 %v254, %v308
    %v310 = vpop.f32.mrf.mxu0
    %311 = vdwg.mxu0
    %v312 = vmul.f32 %v306, %v306
    %v313 = vsel %vm125, %v312, 0.0
    %314 = vadd.xlane.f32.xlu0 %v313
    %v315 = vpop.xlane.xlu0 %314
    %v316 = vadd.f32 %v315, 1e-12
    %v317 = vrsqrt.pop %v316
    %v318 = vmul.f32 %v306, %v317
    %v319 = vmul.f32 %v309, %v309
    %v320 = vsel %vm125, %v319, 0.0
    %321 = vadd.xlane.f32.xlu0 %v320
    %v322 = vpop.xlane.xlu0 %321
    %v323 = vadd.f32 %v322, 1e-12
    %v324 = vrsqrt.pop %v323
    %v325 = vmul.f32 %v309, %v324
    %v327 = vsel %vm125, %v318, 0
    %v330 = vsel %vm125, %v325, 0
    %332 = vmatprep.subr.mxu0 0.0
    %333 = vmatpush1.xpose.msra.mxu0 0.0
    %334 = vmatprep.subr.mxu0 0.0
    %335 = vmatpush1.xpose.msra.mxu0 0.0
    %336 = vmatprep.subr.mxu0 0.0
    %337 = vmatpush1.xpose.msra.mxu0 0.0
    %338 = vmatprep.subr.mxu0 0.0
    %339 = vmatpush1.xpose.msra.mxu0 0.0
    %340 = vmatprep.subr.mxu0 0.0
    %341 = vmatpush1.xpose.msra.mxu0 0.0
    %342 = vmatprep.subr.mxu0 0.0
    %343 = vmatpush1.xpose.msra.mxu0 0.0
    %344 = vmatprep.subr.mxu0 0.0
    %345 = vmatpush1.xpose.msra.mxu0 0.0
    %346 = vmatprep.subr.mxu0 0.0
    %347 = vmatpush1.xpose.msra.mxu0 0.0
    %348 = vmatprep.subr.mxu0 0.0
    %349 = vmatpush1.xpose.msra.mxu0 0.0
    %350 = vmatprep.subr.mxu0 0.0
    %351 = vmatpush1.xpose.msra.mxu0 0.0
    %352 = vmatprep.subr.mxu0 0.0
    %353 = vmatpush1.xpose.msra.mxu0 0.0
    %354 = vmatprep.subr.mxu0 0.0
    %355 = vmatpush1.xpose.msra.mxu0 0.0
    %356 = vmatprep.subr.mxu0 0.0
    %357 = vmatpush1.xpose.msra.mxu0 0.0
    %358 = vmatprep.subr.mxu0 0.0
    %359 = vmatpush1.xpose.msra.mxu0 0.0
    %360 = vmatprep.subr.mxu0 0.0
    %361 = vmatpush1.xpose.msra.mxu0 0.0
    %362 = vmatprep.subr.mxu0 0.0
    %363 = vmatpush1.xpose.msra.mxu0 %v330
    %364 = vmatprep.subr.mxu0 0.0
    %365 = vmatpush2.xpose.msra.mxu0 0.0
    %366 = vmatprep.subr.mxu0 0.0
    %367 = vmatpush2.xpose.msra.mxu0 0.0
    %368 = vmatprep.subr.mxu0 0.0
    %369 = vmatpush2.xpose.msra.mxu0 0.0
    %370 = vmatprep.subr.mxu0 0.0
    %371 = vmatpush2.xpose.msra.mxu0 0.0
    %372 = vmatprep.subr.mxu0 0.0
    %373 = vmatpush2.xpose.msra.mxu0 0.0
    %374 = vmatprep.subr.mxu0 0.0
    %375 = vmatpush2.xpose.msra.mxu0 0.0
    %376 = vmatprep.subr.mxu0 0.0
    %377 = vmatpush2.xpose.msra.mxu0 0.0
    %378 = vmatprep.subr.mxu0 0.0
    %379 = vmatpush2.xpose.msra.mxu0 0.0
    %380 = vmatprep.subr.mxu0 0.0
    %381 = vmatpush2.xpose.msra.mxu0 0.0
    %382 = vmatprep.subr.mxu0 0.0
    %383 = vmatpush2.xpose.msra.mxu0 0.0
    %384 = vmatprep.subr.mxu0 0.0
    %385 = vmatpush2.xpose.msra.mxu0 0.0
    %386 = vmatprep.subr.mxu0 0.0
    %387 = vmatpush2.xpose.msra.mxu0 0.0
    %388 = vmatprep.subr.mxu0 0.0
    %389 = vmatpush2.xpose.msra.mxu0 0.0
    %390 = vmatprep.subr.mxu0 0.0
    %391 = vmatpush2.xpose.msra.mxu0 0.0
    %392 = vmatprep.subr.mxu0 0.0
    %393 = vmatpush2.xpose.msra.mxu0 0.0
    %394 = vmatprep.subr.mxu0 0.0
    %395 = vmatpush2.xpose.msra.mxu0 0.0
    %396 = vmatprep.mubr.f32.mxu0 0.0
    %397 = vmatmul.mubr.f32.gmra.mxu0 %v327
    %v398 = vpop.f32.mrf.mxu0
    %v399 = vadd.f32 0.0, %v398
    %v400 = vpop.f32.mrf.mxu0
    %401 = vdwg.mxu0
    %v402 = vmul.f32 %v399, 5.0
    %v403 = vlaneseq
    %v404 = vshrl.u32 %v403, 7
    %v405 = vlaneseq
    %v406 = vand.u32 %v405, 127
    %vm407 = vcmp.eq.s32.totalorder %v404, %v406
    %v408 = vsel %vm407, %v402, 0.0
    %vm409 = vcmask 64512
    %v410 = vsel %vm409, %v408, 0.0
    %411 = vadd.xlane.f32.xlu0 %v410
    %v412 = vpop.xlane.xlu0 %411
    %v413 = vsel %vm409, %v402, -inf
    %414 = vmax.xlane.f32.xlu0 %v413
    %v415 = vpop.xlane.xlu0 %414
    %v416 = vsub.f32 %v402, %v415
    %v417 = vmul.f32 %v416, 1.442695
    %v418 = vpow.pop %v417
    %v419 = vsel %vm409, %v418, 0.0
    %420 = vadd.xlane.f32.xlu0 %v419
    %v421 = vpop.xlane.xlu0 %420
    %v422 = vlog2.pop %v421
    %v423 = vmul.f32 %v422, 0.6931472
    %v424 = vadd.f32 %v415, %v423
    %v425 = vrot.slane %v413, 4
    %v426 = vmax.f32 %v413, %v425
    %v427 = vrot.slane %v426, 2
    %v428 = vmax.f32 %v426, %v427
    %v429 = vrot.slane %v428, 1
    %v430 = vmax.f32 %v428, %v429
    %v431 = vsub.f32 %v402, %v430
    %v432 = vmul.f32 %v431, 1.442695
    %v433 = vpow.pop %v432
    %v434 = vsel %vm409, %v433, 0.0
    %v435 = vrot.slane %v434, 4
    %v436 = vadd.f32 %v434, %v435
    %v437 = vrot.slane %v436, 2
    %v438 = vadd.f32 %v436, %v437
    %v439 = vrot.slane %v438, 1
    %v440 = vadd.f32 %v438, %v439
    %v441 = vlog2.pop %v440
    %v442 = vmul.f32 %v441, 0.6931472
    %v443 = vadd.f32 %v430, %v442
    %vm444 = vcmask 7168
    %v445 = vsel %vm444, %v424, 0.0
    %446 = vadd.xlane.f32.xlu0 %v445
    %v447 = vpop.xlane.xlu0 %446
    %v448 = vrot.slane %v447, 4
    %v449 = vadd.f32 %v447, %v448
    %v450 = vrot.slane %v449, 2
    %v451 = vadd.f32 %v449, %v450
    %v452 = vrot.slane %v451, 1
    %v453 = vadd.f32 %v451, %v452
    %s454 = vtos %v453
    %v455 = vrcp.pop 8.0
    %s456 = vtos %v455
    %s457 = smul.f32 %s454, %s456
    %vm458 = vcmask 57344
    %v459 = vsel %vm458, %v443, 0.0
    %460 = vadd.xlane.f32.xlu0 %v459
    %v461 = vpop.xlane.xlu0 %460
    %v462 = vrot.slane %v461, 4
    %v463 = vadd.f32 %v461, %v462
    %v464 = vrot.slane %v463, 2
    %v465 = vadd.f32 %v463, %v464
    %v466 = vrot.slane %v465, 1
    %v467 = vadd.f32 %v465, %v466
    %s468 = vtos %v467
    %v469 = vrcp.pop 8.0
    %s470 = vtos %v469
    %s471 = smul.f32 %s468, %s470
    %s472 = sadd.f32 %s457, %s471
    %s473 = smul.f32 %s472, 0.5
    %v474 = vsel %vm444, %v412, 0.0
    %475 = vadd.xlane.f32.xlu0 %v474
    %v476 = vpop.xlane.xlu0 %475
    %v477 = vrot.slane %v476, 4
    %v478 = vadd.f32 %v476, %v477
    %v479 = vrot.slane %v478, 2
    %v480 = vadd.f32 %v478, %v479
    %v481 = vrot.slane %v480, 1
    %v482 = vadd.f32 %v480, %v481
    %s483 = vtos %v482
    %v484 = vrcp.pop 8.0
    %s485 = vtos %v484
    %s486 = smul.f32 %s483, %s485
    %s487 = ssub.f32 %s473, %s486
    %v488 = vadd.f32 %v172, %v173
    %v489 = vmul.f32 %v488, 0.5
    %v490 = vld [vmem:[#allocation8] sm:$0xf]
    %v491 = vld [vmem:[#allocation8 + $0x4] sm:$0xf]
    %v492 = vld [vmem:[#allocation8 + $0x8] sm:$0xf]
    %v493 = vld [vmem:[#allocation8 + $0xc] sm:$0xf]
    %v494 = vpack.c.bf16 %v489, %v489
    %v495 = vld [vmem:[#allocation10] sm:$0x1]
    %v497 = vlaneseq
    %v498 = vshrl.u32 %v497, 7
    %v499 = vsub.s32 0, %v498
    %v500 = vrot.slane %v495, %v499
    %v506 = vunpack.c.l.b16 %v490
    %v507 = vunpack.c.l.b16 %v491
    %v508 = vunpack.c.l.b16 %v492
    %v509 = vunpack.c.l.b16 %v493
    %v510 = vpack.c.b16 %v507, %v506
    %v511 = vpack.c.b16 %v509, %v508
    %v515 = vsel %vm125, %v494, 0
    %517 = vmatprep.subr.bf16.mxu0 0
    %518 = vmatpush1.bf16.msra.mxu0 0
    %519 = vmatprep.subr.bf16.mxu0 0
    %520 = vmatpush1.bf16.msra.mxu0 0
    %521 = vmatprep.subr.bf16.mxu0 0
    %522 = vmatpush1.bf16.msra.mxu0 0
    %523 = vmatprep.subr.bf16.mxu0 0
    %524 = vmatpush1.bf16.msra.mxu0 0
    %525 = vmatprep.subr.bf16.mxu0 0
    %526 = vmatpush1.bf16.msra.mxu0 0
    %527 = vmatprep.subr.bf16.mxu0 0
    %528 = vmatpush1.bf16.msra.mxu0 0
    %529 = vmatprep.subr.bf16.mxu0 0
    %530 = vmatpush1.bf16.msra.mxu0 %v511
    %531 = vmatprep.subr.bf16.mxu0 0
    %532 = vmatpush1.bf16.msra.mxu0 %v510
    %533 = vmatprep.subr.bf16.mxu0 0
    %534 = vmatpush2.bf16.msra.mxu0 0
    %535 = vmatprep.subr.bf16.mxu0 0
    %536 = vmatpush2.bf16.msra.mxu0 0
    %537 = vmatprep.subr.bf16.mxu0 0
    %538 = vmatpush2.bf16.msra.mxu0 0
    %539 = vmatprep.subr.bf16.mxu0 0
    %540 = vmatpush2.bf16.msra.mxu0 0
    %541 = vmatprep.subr.bf16.mxu0 0
    %542 = vmatpush2.bf16.msra.mxu0 0
    %543 = vmatprep.subr.bf16.mxu0 0
    %544 = vmatpush2.bf16.msra.mxu0 0
    %545 = vmatprep.subr.bf16.mxu0 0
    %546 = vmatpush2.bf16.msra.mxu0 0
    %547 = vmatprep.subr.bf16.mxu0 0
    %548 = vmatpush2.bf16.msra.mxu0 0
    %549 = vmatprep.mubr.bf16.mxu0 0
    %550 = vmatmul.mubr.bf16.gmra.mxu0 %v515
    %v551 = vpop.f32.mrf.mxu0
    %v552 = vadd.f32 %v500, %v551
    %v553 = vpop.f32.mrf.mxu0
    %v554 = vpop.f32.mrf.mxu0
    %v555 = vpop.f32.mrf.mxu0
    %556 = vdwg.mxu0
    %v557 = vmul.f32 %v552, 0.01
    %v558 = vmax.f32 %v552, %v557
    %v559 = vld [vmem:[%s1] sm:$0xff]
    %560 = vset.pattern.permute.xlu0 0
    %561 = vperm.xlu0 %560, %v559
    %v562 = vpop.permute.xlu0 %561
    %vm563 = vcmp.eq.s32.totalorder %v562, %v406
    %v564 = vsel %vm563, 1, 0
    %v565 = vcvt.s32.f32 %v564
    %v566 = vmul.f32 %v565, %v558
    %vm567 = vcmask 39936
    %v568 = vsel %vm567, %v566, 0.0
    %569 = vadd.xlane.f32.xlu0 %v568
    %v570 = vpop.xlane.xlu0 %569
    %v571 = vsel %vm567, %v558, -inf
    %572 = vmax.xlane.f32.xlu0 %v571
    %v573 = vpop.xlane.xlu0 %572
    %v574 = vsub.f32 %v558, %v573
    %v575 = vmul.f32 %v574, 1.442695
    %v576 = vpow.pop %v575
    %v577 = vsel %vm567, %v576, 0.0
    %578 = vadd.xlane.f32.xlu0 %v577
    %v579 = vpop.xlane.xlu0 %578
    %v580 = vlog2.pop %v579
    %v581 = vmul.f32 %v580, 0.6931472
    %v582 = vadd.f32 %v573, %v581
    %v583 = vsub.f32 %v582, %v570
    %v584 = vsel %vm444, %v583, 0.0
    %585 = vadd.xlane.f32.xlu0 %v584
    %v586 = vpop.xlane.xlu0 %585
    %v587 = vrot.slane %v586, 4
    %v588 = vadd.f32 %v586, %v587
    %v589 = vrot.slane %v588, 2
    %v590 = vadd.f32 %v588, %v589
    %v591 = vrot.slane %v590, 1
    %v592 = vadd.f32 %v590, %v591
    %s593 = vtos %v592
    %v594 = vrcp.pop 8.0
    %s595 = vtos %v594
    %s596 = smul.f32 %s593, %s595
    %s597 = sadd.f32 %s487, %s596
    %vm598 = vcmp.eq.s32.totalorder %v404, 0
    %vm599 = vcmp.eq.s32.totalorder %v406, 6
    %vm600 = vmand %vm598, %vm599
    %v601 = vstv %s597
    %v602 = vsel %vm600, %v601, %v558
    %603 = vst.msk [vmem:[#allocation11] sm:$0xff] %vm125, %v489
    %604 = vst [vmem:[%s11] sm:$0xff] %v602
    // Predicated region
    $region62: #{cl_accum_citation_pop_forward.1} parent=1 // pred_check
      _
    $region63: #{cl_accum_citation_pop_forward.1} parent=1 // pred_check_branch
      %606 = sbr.rel (0) target = $region65
    $region64: #{cl_accum_citation_pop_forward.1} parent=1 // pred_region
      %s608 = ssub.s32 128, 128
      %609 = vsyncadd [#allocation4], %s608
      %s611 = sshll.u32 [#allocation11], 4
      %s612 = int_to_ptr.vmem [resolvable:$true] %s611
      %614 = dma.vmem_to_hbm [thread:$0]  %s612, 128, %s10, [#allocation4]
    $region65: #{cl_accum_citation_pop_forward.1} parent=1 // pred_fallthru
      _
    // Predicated region
    $region66: #{cl_accum_citation_pop_forward.1} parent=1 // pred_check
      _
    $region67: #{cl_accum_citation_pop_forward.1} parent=1 // pred_check_branch
      %616 = sbr.rel (0) target = $region69
    $region68: #{cl_accum_citation_pop_forward.1} parent=1 // pred_region
      _
    $region69: #{cl_accum_citation_pop_forward.1} parent=1 // pred_fallthru
      _
    // Predicated region
    $region70: #{cl_accum_citation_pop_forward.1} parent=1 // pred_check
      _
    $region71: #{cl_accum_citation_pop_forward.1} parent=1 // pred_check_branch
      %618 = sbr.rel (0) target = $region73
    $region72: #{cl_accum_citation_pop_forward.1} parent=1 // pred_region
      %619 = dma.done [#allocation4], 128
    $region73: #{cl_accum_citation_pop_forward.1} parent=1 // pred_fallthru
      _
    // Predicated region
    $region74: #{cl_accum_citation_pop_forward.1} parent=1 // pred_check
      _
    $region75: #{cl_accum_citation_pop_forward.1} parent=1 // pred_check_branch
      %621 = sbr.rel (0) target = $region77
    $region76: #{cl_accum_citation_pop_forward.1} parent=1 // pred_region
      _
    $region77: #{cl_accum_citation_pop_forward.1} parent=1 // pred_fallthru
      _
    %622 = vsyncpa [#allocation3], 1
    %623 = vsyncpa [#allocation6], 1
    %624 = vsyncpa [#allocation9], 1
    %625 = vsyncpa [#allocation4], 1

</llo_original>
